<compile_context>
chip_gen: v7x
topology: tpu7x:2x2x1
jax: 0.10.0
libtpu: 0.0.40
codegen_flags: <defaults>
</compile_context>

<pallas_src>
import functools

import jax
import jax.numpy as jnp
from jax import lax
from jax.experimental import pallas as pl
from jax.experimental.pallas import tpu as pltpu


# ------------------------------ kernel body ---------------------------------

def critic_kernel(x_ref, w01T_ref, b01_ref, w2T_ref, b2_ref, wf_ref, bf_ref,
                  o_ref, *, compute_dtype):
    # x_ref: (bt, state_dim) natural-layout block of the streamed state.
    # All activations live in the transposed, lane-dense (hidden, bt)
    # orientation: features on sublanes, batch on lanes.
    x = x_ref[...].astype(compute_dtype)          # VPU cast; no extra HBM pass

    # fci folded into fc1 (done once on the host): h1 = relu(W01^T . X^T + b01^T).
    # Contract the LAST dim of both operands (A @ B^T) so the streamed block
    # never needs a host-side transpose; result is already (hidden, bt).
    h1 = lax.dot_general(
        w01T_ref[...], x,
        dimension_numbers=(((1,), (1,)), ((), ())),
        preferred_element_type=jnp.float32) + b01_ref[...]
    h1 = jnp.maximum(h1, 0.0)                                     # ReLU (f32 VPU)

    # fc2 + LeakyReLU(0.01) -- single VALU max instead of compare+select.
    h2 = jnp.dot(w2T_ref[...], h1.astype(compute_dtype),
                 preferred_element_type=jnp.float32) + b2_ref[...]
    h2 = jnp.maximum(h2, 0.01 * h2)                               # f32 VPU

    # fcf (hidden -> 1) as VPU multiply + sublane reduce: lane-dense (1, bt)
    # output, no 1-column MXU matmul.
    v = jnp.sum(h2 * wf_ref[...], axis=0, keepdims=True) + bf_ref[...]
    o_ref[...] = v.astype(o_ref.dtype)


# -------------------------- one-time parameter prep --------------------------

def prepare_params(params, *, matmul_dtype=jnp.bfloat16):
    """Hoisted host-side preprocessing (call once when params change).

    * Folds the activation-free fci layer into fc1:  w01 = Wi @ W1,
      b01 = bi @ W1 + b1  -> the kernel does 2 matmuls + 1 reduce.
    * Transposes weights into the lane-dense orientation the kernel uses.
    * Casts matmul operands to `matmul_dtype` (bf16 default; accumulation and
      all elementwise work stay f32).  Pass jnp.float32 for bit-close parity.
    """
    wi, bi, w1, b1, w2, b2, wf, bf = params
    w01 = wi @ w1                                      # (state_dim, hidden)
    b01 = bi @ w1 + b1                                 # (1, hidden)
    return dict(
        w01T=w01.T.astype(matmul_dtype),               # (hidden, state_dim)
        b01T=b01.T.astype(jnp.float32),                # (hidden, 1)
        w2T=w2.T.astype(matmul_dtype),                 # (hidden, hidden)
        b2T=b2.T.astype(jnp.float32),                  # (hidden, 1)
        wf=wf.astype(jnp.float32),                     # (hidden, 1)
        bf=bf.astype(jnp.float32),                     # (1, 1)
        matmul_dtype=matmul_dtype,
        state_dim=int(wi.shape[0]),
        hidden=int(wi.shape[1]),
    )


# ------------------------------ tile sizing ----------------------------------

def _auto_batch_tile(state_dim, hidden, in_bytes, mm_bytes,
                     vmem_budget_bytes=8 << 20):
    """Size the batch tile against a VMEM budget instead of a constant.

    Budget (8 MiB) fits under the scoped-VMEM defaults of every generation
    (v5e 16 MiB, v6e/v7x 32 MiB) even counting double-buffering, so no
    vmem_limit_bytes override is needed.  Per-column bytes: double-buffered
    streamed state block + two (hidden, bt) f32 activation temporaries +
    double-buffered (1, bt) f32 output row; resident weights come off the top.
    """
    weight_bytes = 2 * ((hidden * state_dim + hidden * hidden) * mm_bytes
                        + (3 * hidden + 1) * 4)
    avail = max(vmem_budget_bytes - weight_bytes, 1 << 20)
    per_col = 2 * state_dim * in_bytes + 2 * hidden * 4 + 2 * 4
    bt = avail // per_col
    bt = max(256, (bt // 256) * 256)        # 256-aligned for the v6e/v7x MXU
    return int(min(bt, 32768))


# -------------------------------- forward ------------------------------------

def critic_forward(state, prepared, *, batch_tile=None):
    """state: (B, state_dim) float array (f32 or bf16).  Returns (B, 1) f32.

    Passing a bf16 `state` additionally halves the streamed HBM bytes; an f32
    state is cast to the matmul dtype inside the kernel (free VPU cast, no
    extra HBM pass).
    """
    B, state_dim = state.shape
    assert state_dim == prepared["state_dim"]
    hidden = prepared["hidden"]
    mm_dtype = prepared["matmul_dtype"]

    in_bytes = jnp.dtype(state.dtype).itemsize
    mm_bytes = jnp.dtype(mm_dtype).itemsize
    if batch_tile is None:
        batch_tile = _auto_batch_tile(state_dim, hidden, in_bytes, mm_bytes)

    if B <= batch_tile:
        bt = B                                   # single full-extent tile
    else:
        bt = ((batch_tile + 127) // 128) * 128   # lane-align (256-mult preferred)
    grid = (pl.cdiv(B, bt),)                     # partial last block allowed:
    # out-of-bounds tail reads give garbage columns (never reduced across
    # batch) and out-of-bounds output writes are masked -> no batch padding.

    w01T, b01T = prepared["w01T"], prepared["b01T"]
    w2T, b2T = prepared["w2T"], prepared["b2T"]
    wf, bf = prepared["wf"], prepared["bf"]

    def full(a):                                  # tiny resident weight blocks
        return pl.BlockSpec(a.shape, lambda i, _n=a.ndim: (0,) * _n)

    flops = 2 * B * (hidden * state_dim + hidden * hidden + hidden)
    bytes_accessed = (
        int(state.size) * in_bytes
        + sum(int(a.size) * a.dtype.itemsize
              for a in (w01T, b01T, w2T, b2T, wf, bf))
        + B * 4)
    cost = pl.CostEstimate(flops=int(flops), transcendentals=0,
                           bytes_accessed=int(bytes_accessed))

    out = pl.pallas_call(
        functools.partial(critic_kernel, compute_dtype=mm_dtype),
        out_shape=jax.ShapeDtypeStruct((1, B), jnp.float32),
        grid_spec=pltpu.PrefetchScalarGridSpec(
            num_scalar_prefetch=0,
            grid=grid,
            in_specs=[
                pl.BlockSpec((bt, state_dim), lambda i: (i, 0)),  # streamed state
                full(w01T), full(b01T),
                full(w2T), full(b2T),
                full(wf), full(bf),
            ],
            out_specs=pl.BlockSpec((1, bt), lambda i: (0, i)),    # lane-dense out
        ),
        compiler_params=pltpu.CompilerParams(
            dimension_semantics=("parallel",)),
        cost_estimate=cost,
    )(state, w01T, b01T, w2T, b2T, wf, bf)

    return out.reshape(B, 1)


# ---------------------------- reference & init -------------------------------

def init_params(key, state_dim, hidden_dim):
    """Deterministic init mimicking nn.Linear default (uniform +/- 1/sqrt(fan_in))."""
    def linear(k, fan_in, fan_out):
        kw, kb = jax.random.split(k)
        bound = 1.0 / jnp.sqrt(fan_in)
        w = jax.random.uniform(kw, (fan_in, fan_out), jnp.float32, -bound, bound)
        b = jax.random.uniform(kb, (1, fan_out), jnp.float32, -bound, bound)
        return w, b

    k0, k1, k2, k3 = jax.random.split(key, 4)
    wi, bi = linear(k0, state_dim, hidden_dim)   # fci
    w1, b1 = linear(k1, hidden_dim, hidden_dim)  # fc1
    w2, b2 = linear(k2, hidden_dim, hidden_dim)  # fc2
    wf, bf = linear(k3, hidden_dim, 1)           # fcf
    return (wi, bi, w1, b1, w2, b2, wf, bf)


def critic_reference(state, params):
    wi, bi, w1, b1, w2, b2, wf, bf = params
    x = state @ wi + bi
    x = jnp.maximum(x @ w1 + b1, 0.0)
    h = x @ w2 + b2
    h = jnp.where(h >= 0.0, h, 0.01 * h)
    return h @ wf + bf


if __name__ == "__main__":
    key = jax.random.PRNGKey(0)
    k_params, k_state = jax.random.split(key)

    state_dim, hidden_dim = 16, 32
    params = init_params(k_params, state_dim, hidden_dim)

    # One-time host prep (hoisted out of the forward path).
    prep_f32 = prepare_params(params, matmul_dtype=jnp.float32)   # bit-close path
    prep_bf16 = prepare_params(params)                            # default bf16 path

    # Small single-tile case (auto tile >> B, block spans the full extents).
    batch = 8
    state = jax.random.normal(k_state, (batch, state_dim), jnp.float32)
    value = jax.block_until_ready(critic_forward(state, prep_f32))
    ref = critic_reference(state, params)
    assert value.shape == (batch, 1)
    assert jnp.allclose(value, ref, atol=1e-5, rtol=1e-5)

    # Multi-tile case with a partial last block (600 = 2*256 + 88), no padding.
    batch2 = 600
    state2 = jax.random.normal(jax.random.PRNGKey(1), (batch2, state_dim),
                               jnp.float32)
    value2 = jax.block_until_ready(
        critic_forward(state2, prep_f32, batch_tile=256))
    ref2 = critic_reference(state2, params)
    assert value2.shape == (batch2, 1)
    assert jnp.allclose(value2, ref2, atol=1e-5, rtol=1e-5)

    # Default bf16 matmul-operand path (f32 accumulate / elementwise).
    value3 = jax.block_until_ready(
        critic_forward(state2, prep_bf16, batch_tile=256))
    assert value3.shape == (batch2, 1)
    assert jnp.allclose(value3, ref2, atol=1e-1, rtol=1e-1)

    # Auto-sized tile (collapses to one tile here since B << auto tile).
    value4 = jax.block_until_ready(critic_forward(state2, prep_bf16))
    assert value4.shape == (batch2, 1)
    assert jnp.allclose(value4, ref2, atol=1e-1, rtol=1e-1)

    print("KERNEL_OK")
</pallas_src>

<mosaic_0001>
module attributes {stable_mosaic.version = 11 : i64} {
  func.func @critic_kernel(%arg0: i32, %arg1: memref<8x16xf32, #tpu.memory_space<vmem>>, %arg2: memref<32x16xf32, #tpu.memory_space<vmem>>, %arg3: memref<32x1xf32, #tpu.memory_space<vmem>>, %arg4: memref<32x32xf32, #tpu.memory_space<vmem>>, %arg5: memref<32x1xf32, #tpu.memory_space<vmem>>, %arg6: memref<32x1xf32, #tpu.memory_space<vmem>>, %arg7: memref<1x1xf32, #tpu.memory_space<vmem>>, %arg8: memref<1x8xf32, #tpu.memory_space<vmem>>) attributes {dimension_semantics = [#tpu.dimension_semantics<parallel>], iteration_bounds = array<i64: 1>, scalar_prefetch = 0 : i64, scratch_operands = 0 : i64, tpu.core_type = #tpu.core_type<tc>, window_params = [{transform_indices = @transform_0, window_bounds = array<i64: 8, 16>}, {pipeline_mode = #tpu.pipeline_mode<synchronous>, transform_indices = @transform_1, window_bounds = array<i64: 32, 16>}, {pipeline_mode = #tpu.pipeline_mode<synchronous>, transform_indices = @transform_2, window_bounds = array<i64: 32, 1>}, {pipeline_mode = #tpu.pipeline_mode<synchronous>, transform_indices = @transform_3, window_bounds = array<i64: 32, 32>}, {pipeline_mode = #tpu.pipeline_mode<synchronous>, transform_indices = @transform_4, window_bounds = array<i64: 32, 1>}, {pipeline_mode = #tpu.pipeline_mode<synchronous>, transform_indices = @transform_5, window_bounds = array<i64: 32, 1>}, {pipeline_mode = #tpu.pipeline_mode<synchronous>, transform_indices = @transform_6, window_bounds = array<i64: 1, 1>}, {transform_indices = @transform_7, window_bounds = array<i64: 1, 8>}]} {
    %c0 = arith.constant 0 : index
    %c0_0 = arith.constant 0 : index
    %0 = vector.load %arg1[%c0, %c0_0] : memref<8x16xf32, #tpu.memory_space<vmem>>, vector<8x16xf32>
    %c0_1 = arith.constant 0 : index
    %c0_2 = arith.constant 0 : index
    %1 = vector.load %arg2[%c0_1, %c0_2] : memref<32x16xf32, #tpu.memory_space<vmem>>, vector<32x16xf32>
    %cst = arith.constant dense<0.000000e+00> : vector<32x8xf32>
    %2 = tpu.matmul %1, %0, %cst {dimension_numbers = #tpu.dot_dimension_numbers<[1], [1], [0], [0], [0, 0, 1, 0], [], []>} : vector<32x16xf32>, vector<8x16xf32>, vector<32x8xf32> -> vector<32x8xf32>
    %c0_3 = arith.constant 0 : index
    %c0_4 = arith.constant 0 : index
    %3 = vector.load %arg3[%c0_3, %c0_4] : memref<32x1xf32, #tpu.memory_space<vmem>>, vector<32x1xf32>
    %4 = vector.broadcast %3 : vector<32x1xf32> to vector<32x8xf32>
    %5 = arith.addf %2, %4 : vector<32x8xf32>
    %cst_5 = arith.constant 0.000000e+00 : f32
    %6 = vector.broadcast %cst_5 : f32 to vector<32x8xf32>
    %7 = arith.maximumf %5, %6 : vector<32x8xf32>
    %c0_6 = arith.constant 0 : index
    %c0_7 = arith.constant 0 : index
    %8 = vector.load %arg4[%c0_6, %c0_7] : memref<32x32xf32, #tpu.memory_space<vmem>>, vector<32x32xf32>
    %cst_8 = arith.constant dense<0.000000e+00> : vector<32x8xf32>
    %9 = tpu.matmul %8, %7, %cst_8 {dimension_numbers = #tpu.dot_dimension_numbers<[1], [0], [0], [1], [0, 0, 1, 1], [], []>} : vector<32x32xf32>, vector<32x8xf32>, vector<32x8xf32> -> vector<32x8xf32>
    %c0_9 = arith.constant 0 : index
    %c0_10 = arith.constant 0 : index
    %10 = vector.load %arg5[%c0_9, %c0_10] : memref<32x1xf32, #tpu.memory_space<vmem>>, vector<32x1xf32>
    %11 = vector.broadcast %10 : vector<32x1xf32> to vector<32x8xf32>
    %12 = arith.addf %9, %11 : vector<32x8xf32>
    %cst_11 = arith.constant 0.00999999977 : f32
    %13 = vector.broadcast %cst_11 : f32 to vector<32x8xf32>
    %14 = arith.mulf %13, %12 : vector<32x8xf32>
    %15 = arith.maximumf %12, %14 : vector<32x8xf32>
    %c0_12 = arith.constant 0 : index
    %c0_13 = arith.constant 0 : index
    %16 = vector.load %arg6[%c0_12, %c0_13] : memref<32x1xf32, #tpu.memory_space<vmem>>, vector<32x1xf32>
    %17 = vector.broadcast %16 : vector<32x1xf32> to vector<32x8xf32>
    %18 = arith.mulf %15, %17 : vector<32x8xf32>
    %cst_14 = arith.constant dense<0.000000e+00> : vector<8xf32>
    %19 = vector.multi_reduction <add>, %18, %cst_14 [0] : vector<32x8xf32> to vector<8xf32>
    %20 = vector.shape_cast %19 : vector<8xf32> to vector<1x8xf32>
    %c0_15 = arith.constant 0 : index
    %c0_16 = arith.constant 0 : index
    %21 = vector.load %arg7[%c0_15, %c0_16] : memref<1x1xf32, #tpu.memory_space<vmem>>, vector<1x1xf32>
    %22 = vector.broadcast %21 : vector<1x1xf32> to vector<1x8xf32>
    %23 = arith.addf %20, %22 : vector<1x8xf32>
    %c0_17 = arith.constant 0 : index
    %c0_18 = arith.constant 0 : index
    %24 = vector.load %arg8[%c0_17, %c0_18] : memref<1x8xf32, #tpu.memory_space<vmem>>, vector<1x8xf32>
    tpu.vector_store %arg8[%c0_17, %c0_18], %23 {strides = array<i32>} : memref<1x8xf32, #tpu.memory_space<vmem>>, vector<1x8xf32>,
    return
  }
  func.func @transform_0(%arg0: i32) -> (i32, i32) {
    %c0_i32 = arith.constant 0 : i32
    %c0_i32_0 = arith.constant 0 : i32
    return %arg0, %c0_i32 : i32, i32
  }
  func.func @transform_1(%arg0: i32) -> (i32, i32) {
    %c0_i32 = arith.constant 0 : i32
    %c0_i32_0 = arith.constant 0 : i32
    %c0_i32_1 = arith.constant 0 : i32
    return %c0_i32, %c0_i32_0 : i32, i32
  }
  func.func @transform_2(%arg0: i32) -> (i32, i32) {
    %c0_i32 = arith.constant 0 : i32
    %c0_i32_0 = arith.constant 0 : i32
    %c0_i32_1 = arith.constant 0 : i32
    return %c0_i32, %c0_i32_0 : i32, i32
  }
  func.func @transform_3(%arg0: i32) -> (i32, i32) {
    %c0_i32 = arith.constant 0 : i32
    %c0_i32_0 = arith.constant 0 : i32
    %c0_i32_1 = arith.constant 0 : i32
    return %c0_i32, %c0_i32_0 : i32, i32
  }
  func.func @transform_4(%arg0: i32) -> (i32, i32) {
    %c0_i32 = arith.constant 0 : i32
    %c0_i32_0 = arith.constant 0 : i32
    %c0_i32_1 = arith.constant 0 : i32
    return %c0_i32, %c0_i32_0 : i32, i32
  }
  func.func @transform_5(%arg0: i32) -> (i32, i32) {
    %c0_i32 = arith.constant 0 : i32
    %c0_i32_0 = arith.constant 0 : i32
    %c0_i32_1 = arith.constant 0 : i32
    return %c0_i32, %c0_i32_0 : i32, i32
  }
  func.func @transform_6(%arg0: i32) -> (i32, i32) {
    %c0_i32 = arith.constant 0 : i32
    %c0_i32_0 = arith.constant 0 : i32
    %c0_i32_1 = arith.constant 0 : i32
    return %c0_i32, %c0_i32_0 : i32, i32
  }
  func.func @transform_7(%arg0: i32) -> (i32, i32) {
    %c0_i32 = arith.constant 0 : i32
    %c0_i32_0 = arith.constant 0 : i32
    return %c0_i32, %arg0 : i32, i32
  }
}

</mosaic_0001>

<llo_original>
// kernel: tpu_custom_call.1
$region0: #{tpu_custom_call.1}
  #allocation0 [shape = 'u32[]', space=smem, size = 0x4, offset = 0x4, fixed_abs, tag = 'smem constant byte address 0x4 - core index']
  #allocation1 [shape = 'u32[144,128]{1,0:T(1,128)}', space=vmem, size = 0x12000, scoped, tag = 'internal scratch']
  #allocation2 [shape = 'f32[1,1]{1,0:T(1,128)S(1)}', space=vmem, size = 0x200, scoped, tag = 'scoped memory for tpu_custom_call.1']
  %s0 = inlined_call_operand.vmem [shape: f32[8,16], index: 0, kind: input, shape index: {}]
  %s1 = inlined_call_operand.vmem [shape: f32[32,16], index: 1, kind: input, shape index: {}]
  %s2 = inlined_call_operand.vmem [shape: f32[32,1], index: 2, kind: input, shape index: {}]
  %s3 = inlined_call_operand.vmem [shape: f32[32,32], index: 3, kind: input, shape index: {}]
  %s4 = inlined_call_operand.vmem [shape: f32[32,1], index: 4, kind: input, shape index: {}]
  %s5 = inlined_call_operand.vmem [shape: f32[32,1], index: 5, kind: input, shape index: {}]
  %s6 = inlined_call_operand.<no memory space> [shape: f32[1,1], index: 6, kind: input, shape index: {}]
  %s7 = inlined_call_operand.hbm [shape: f32[1,8], index: 7, kind: output, shape index: {}]
  %s8 = sld [smem:[#allocation0]]
  $region38: #{tpu_custom_call.1} parent=0
    _
  %s10 = ssub.s32 1, %s8
  %s11 = scalar_select 0, %s10, %s8
  %v12 = vstv %s6
  %13 = vst [vmem:[#allocation2] sm:$0x1] %v12
  $region1: #{tpu_custom_call.1} parent=0
    #allocation3 [shape = 'u8[512]{0}', space=vmem, size = 0x400, scoped, tag = 'output window, operand 0, single buffered']
    #allocation4 [shape = 's32[1]{0}', space=sflag, size = 0x4, scoped, tag = 'scoped memory for tpu_custom_call.1']
    %14 = vsyncpa [#allocation4], 0
    // Predicated region
    $region2: #{tpu_custom_call.1} parent=1 // pred_check
      _
    $region3: #{tpu_custom_call.1} parent=1 // pred_check_branch
      %16 = sbr.rel (0) target = $region5
    $region4: #{tpu_custom_call.1} parent=1 // pred_region
      _
    $region5: #{tpu_custom_call.1} parent=1 // pred_fallthru
      _
    // Predicated region
    $region6: #{tpu_custom_call.1} parent=1 // pred_check
      _
    $region7: #{tpu_custom_call.1} parent=1 // pred_check_branch
      %18 = sbr.rel (0) target = $region9
    $region8: #{tpu_custom_call.1} parent=1 // pred_region
      _
    $region9: #{tpu_custom_call.1} parent=1 // pred_fallthru
      _
    // Predicated region
    $region10: #{tpu_custom_call.1} parent=1 // pred_check
      _
    $region11: #{tpu_custom_call.1} parent=1 // pred_check_branch
      %20 = sbr.rel (0) target = $region13
    $region12: #{tpu_custom_call.1} parent=1 // pred_region
      _
    $region13: #{tpu_custom_call.1} parent=1 // pred_fallthru
      _
    // Predicated region
    $region14: #{tpu_custom_call.1} parent=1 // pred_check
      _
    $region15: #{tpu_custom_call.1} parent=1 // pred_check_branch
      %22 = sbr.rel (0) target = $region17
    $region16: #{tpu_custom_call.1} parent=1 // pred_region
      _
    $region17: #{tpu_custom_call.1} parent=1 // pred_fallthru
      _
    // Predicated region
    $region18: #{tpu_custom_call.1} parent=1 // pred_check
      _
    $region19: #{tpu_custom_call.1} parent=1 // pred_check_branch
      %24 = sbr.rel (0) target = $region21
    $region20: #{tpu_custom_call.1} parent=1 // pred_region
      _
    $region21: #{tpu_custom_call.1} parent=1 // pred_fallthru
      _
    // Predicated region
    $region22: #{tpu_custom_call.1} parent=1 // pred_check
      _
    $region23: #{tpu_custom_call.1} parent=1 // pred_check_branch
      %26 = sbr.rel (0) target = $region25
    $region24: #{tpu_custom_call.1} parent=1 // pred_region
      _
    $region25: #{tpu_custom_call.1} parent=1 // pred_fallthru
      _
    // Predicated region
    $region26: #{tpu_custom_call.1} parent=1 // pred_check
      _
    $region27: #{tpu_custom_call.1} parent=1 // pred_check_branch
      %28 = sbr.rel (0) target = $region29
    $region28: #{tpu_custom_call.1} parent=1 // pred_region
      _
    $region29: #{tpu_custom_call.1} parent=1 // pred_fallthru
      _
    %v29 = vld [vmem:[%s0] sm:$0xff]
    %v30 = vld [vmem:[%s1] sm:$0xff]
    %v31 = vld [vmem:[%s1 + $0x8] sm:$0xff]
    %v32 = vld [vmem:[%s1 + $0x10] sm:$0xff]
    %v33 = vld [vmem:[%s1 + $0x18] sm:$0xff]
    %v34 = vld [vmem:[%s2] sm:$0xff]
    %v35 = vld [vmem:[%s2 + $0x8] sm:$0xff]
    %v36 = vld [vmem:[%s2 + $0x10] sm:$0xff]
    %v37 = vld [vmem:[%s2 + $0x18] sm:$0xff]
    %39 = vset.pattern.permute.xlu0 0
    %40 = vperm.xlu0 %39, %v34
    %v41 = vpop.permute.xlu0 %40
    %44 = vset.pattern.permute.xlu0 0
    %45 = vperm.xlu0 %44, %v35
    %v46 = vpop.permute.xlu0 %45
    %49 = vset.pattern.permute.xlu0 0
    %50 = vperm.xlu0 %49, %v36
    %v51 = vpop.permute.xlu0 %50
    %54 = vset.pattern.permute.xlu0 0
    %55 = vperm.xlu0 %54, %v37
    %v56 = vpop.permute.xlu0 %55
    %vm58 = vcmask 130048
    %v60 = vsel %vm58, %v30, 0
    %v63 = vsel %vm58, %v31, 0
    %v66 = vsel %vm58, %v32, 0
    %v69 = vsel %vm58, %v33, 0
    %v72 = vsel %vm58, %v29, 0
    %74 = vmatprep.subr.mxu0 0.0
    %75 = vmatpush1.xpose.msra.mxu0 %v72
    %76 = vmatprep.subr.mxu0 0.0
    %77 = vmatpush1.xpose.msra.mxu0 0.0
    %78 = vmatprep.subr.mxu0 0.0
    %79 = vmatpush1.xpose.msra.mxu0 0.0
    %80 = vmatprep.subr.mxu0 0.0
    %81 = vmatpush1.xpose.msra.mxu0 0.0
    %82 = vmatprep.subr.mxu0 0.0
    %83 = vmatpush1.xpose.msra.mxu0 0.0
    %84 = vmatprep.subr.mxu0 0.0
    %85 = vmatpush1.xpose.msra.mxu0 0.0
    %86 = vmatprep.subr.mxu0 0.0
    %87 = vmatpush1.xpose.msra.mxu0 0.0
    %88 = vmatprep.subr.mxu0 0.0
    %89 = vmatpush1.xpose.msra.mxu0 0.0
    %90 = vmatprep.subr.mxu0 0.0
    %91 = vmatpush1.xpose.msra.mxu0 0.0
    %92 = vmatprep.subr.mxu0 0.0
    %93 = vmatpush1.xpose.msra.mxu0 0.0
    %94 = vmatprep.subr.mxu0 0.0
    %95 = vmatpush1.xpose.msra.mxu0 0.0
    %96 = vmatprep.subr.mxu0 0.0
    %97 = vmatpush1.xpose.msra.mxu0 0.0
    %98 = vmatprep.subr.mxu0 0.0
    %99 = vmatpush1.xpose.msra.mxu0 0.0
    %100 = vmatprep.subr.mxu0 0.0
    %101 = vmatpush1.xpose.msra.mxu0 0.0
    %102 = vmatprep.subr.mxu0 0.0
    %103 = vmatpush1.xpose.msra.mxu0 0.0
    %104 = vmatprep.subr.mxu0 0.0
    %105 = vmatpush1.xpose.msra.mxu0 0.0
    %106 = vmatprep.subr.mxu0 0.0
    %107 = vmatpush1.xpose.msra.mxu0 0.0
    %108 = vmatprep.subr.mxu0 0.0
    %109 = vmatpush1.xpose.msra.mxu0 0.0
    %110 = vmatprep.subr.mxu0 0.0
    %111 = vmatpush1.xpose.msra.mxu0 0.0
    %112 = vmatprep.subr.mxu0 0.0
    %113 = vmatpush1.xpose.msra.mxu0 0.0
    %114 = vmatprep.subr.mxu0 0.0
    %115 = vmatpush1.xpose.msra.mxu0 0.0
    %116 = vmatprep.subr.mxu0 0.0
    %117 = vmatpush1.xpose.msra.mxu0 0.0
    %118 = vmatprep.subr.mxu0 0.0
    %119 = vmatpush1.xpose.msra.mxu0 0.0
    %120 = vmatprep.subr.mxu0 0.0
    %121 = vmatpush1.xpose.msra.mxu0 0.0
    %122 = vmatprep.subr.mxu0 0.0
    %123 = vmatpush1.xpose.msra.mxu0 0.0
    %124 = vmatprep.subr.mxu0 0.0
    %125 = vmatpush1.xpose.msra.mxu0 0.0
    %126 = vmatprep.subr.mxu0 0.0
    %127 = vmatpush1.xpose.msra.mxu0 0.0
    %128 = vmatprep.subr.mxu0 0.0
    %129 = vmatpush1.xpose.msra.mxu0 0.0
    %130 = vmatprep.subr.mxu0 0.0
    %131 = vmatpush1.xpose.msra.mxu0 0.0
    %132 = vmatprep.subr.mxu0 0.0
    %133 = vmatpush1.xpose.msra.mxu0 0.0
    %134 = vmatprep.subr.mxu0 0.0
    %135 = vmatpush1.xpose.msra.mxu0 0.0
    %136 = vmatprep.subr.mxu0 0.0
    %137 = vmatpush1.xpose.msra.mxu0 0.0
    %138 = vmatprep.mubr.f32.mxu0 0.0
    %139 = vmatmul.mubr.f32.gmra.mrb[0].mxu0 %v60
    %v140 = vpop.f32.mrb[0].mxu0
    %v141 = vadd.f32 %v41, %v140
    %v142 = vpop.f32.mrb[0].mxu0
    %143 = vmatprep.mubr.f32.mxu0 0.0
    %144 = vmatmul.mubr.f32.gmra.mrb[0].mxu0 %v63
    %v145 = vpop.f32.mrb[0].mxu0
    %v146 = vadd.f32 %v46, %v145
    %v147 = vpop.f32.mrb[0].mxu0
    %148 = vmatprep.mubr.f32.mxu0 0.0
    %149 = vmatmul.mubr.f32.gmra.mrb[0].mxu0 %v66
    %v150 = vpop.f32.mrb[0].mxu0
    %v151 = vadd.f32 %v51, %v150
    %v152 = vpop.f32.mrb[0].mxu0
    %153 = vmatprep.mubr.f32.mxu0 0.0
    %154 = vmatmul.mubr.f32.gmra.mrb[0].mxu0 %v69
    %v155 = vpop.f32.mrb[0].mxu0
    %v156 = vadd.f32 %v56, %v155
    %v157 = vpop.f32.mrb[0].mxu0
    %158 = vdwg.mxu0
    %v159 = vmax.f32 %v141, 0.0
    %v160 = vmax.f32 %v146, 0.0
    %v161 = vmax.f32 %v151, 0.0
    %v162 = vmax.f32 %v156, 0.0
    %v163 = vld [vmem:[%s3] sm:$0xff]
    %v164 = vld [vmem:[%s3 + $0x8] sm:$0xff]
    %v165 = vld [vmem:[%s3 + $0x10] sm:$0xff]
    %v166 = vld [vmem:[%s3 + $0x18] sm:$0xff]
    %v167 = vld [vmem:[%s4] sm:$0xff]
    %v168 = vld [vmem:[%s4 + $0x8] sm:$0xff]
    %v169 = vld [vmem:[%s4 + $0x10] sm:$0xff]
    %v170 = vld [vmem:[%s4 + $0x18] sm:$0xff]
    %172 = vset.pattern.permute.xlu0 0
    %173 = vperm.xlu0 %172, %v167
    %v174 = vpop.permute.xlu0 %173
    %177 = vset.pattern.permute.xlu0 0
    %178 = vperm.xlu0 %177, %v168
    %v179 = vpop.permute.xlu0 %178
    %182 = vset.pattern.permute.xlu0 0
    %183 = vperm.xlu0 %182, %v169
    %v184 = vpop.permute.xlu0 %183
    %187 = vset.pattern.permute.xlu0 0
    %188 = vperm.xlu0 %187, %v170
    %v189 = vpop.permute.xlu0 %188
    %vm191 = vcmask 261120
    %v193 = vsel %vm191, %v163, 0
    %v196 = vsel %vm191, %v164, 0
    %v199 = vsel %vm191, %v165, 0
    %v202 = vsel %vm191, %v166, 0
    %204 = vmatprep.subr.mxu0 0.0
    %205 = vmatpush1.msra.mxu0 %v159
    %206 = vmatprep.subr.mxu0 0.0
    %207 = vmatpush1.msra.mxu0 %v160
    %208 = vmatprep.subr.mxu0 0.0
    %209 = vmatpush1.msra.mxu0 %v161
    %210 = vmatprep.subr.mxu0 0.0
    %211 = vmatpush1.msra.mxu0 %v162
    %212 = vmatprep.subr.mxu0 0.0
    %213 = vmatpush1.msra.mxu0 0.0
    %214 = vmatprep.subr.mxu0 0.0
    %215 = vmatpush1.msra.mxu0 0.0
    %216 = vmatprep.subr.mxu0 0.0
    %217 = vmatpush1.msra.mxu0 0.0
    %218 = vmatprep.subr.mxu0 0.0
    %219 = vmatpush1.msra.mxu0 0.0
    %220 = vmatprep.subr.mxu0 0.0
    %221 = vmatpush1.msra.mxu0 0.0
    %222 = vmatprep.subr.mxu0 0.0
    %223 = vmatpush1.msra.mxu0 0.0
    %224 = vmatprep.subr.mxu0 0.0
    %225 = vmatpush1.msra.mxu0 0.0
    %226 = vmatprep.subr.mxu0 0.0
    %227 = vmatpush1.msra.mxu0 0.0
    %228 = vmatprep.subr.mxu0 0.0
    %229 = vmatpush1.msra.mxu0 0.0
    %230 = vmatprep.subr.mxu0 0.0
    %231 = vmatpush1.msra.mxu0 0.0
    %232 = vmatprep.subr.mxu0 0.0
    %233 = vmatpush1.msra.mxu0 0.0
    %234 = vmatprep.subr.mxu0 0.0
    %235 = vmatpush1.msra.mxu0 0.0
    %236 = vmatprep.subr.mxu0 0.0
    %237 = vmatpush1.msra.mxu0 0.0
    %238 = vmatprep.subr.mxu0 0.0
    %239 = vmatpush1.msra.mxu0 0.0
    %240 = vmatprep.subr.mxu0 0.0
    %241 = vmatpush1.msra.mxu0 0.0
    %242 = vmatprep.subr.mxu0 0.0
    %243 = vmatpush1.msra.mxu0 0.0
    %244 = vmatprep.subr.mxu0 0.0
    %245 = vmatpush1.msra.mxu0 0.0
    %246 = vmatprep.subr.mxu0 0.0
    %247 = vmatpush1.msra.mxu0 0.0
    %248 = vmatprep.subr.mxu0 0.0
    %249 = vmatpush1.msra.mxu0 0.0
    %250 = vmatprep.subr.mxu0 0.0
    %251 = vmatpush1.msra.mxu0 0.0
    %252 = vmatprep.subr.mxu0 0.0
    %253 = vmatpush1.msra.mxu0 0.0
    %254 = vmatprep.subr.mxu0 0.0
    %255 = vmatpush1.msra.mxu0 0.0
    %256 = vmatprep.subr.mxu0 0.0
    %257 = vmatpush1.msra.mxu0 0.0
    %258 = vmatprep.subr.mxu0 0.0
    %259 = vmatpush1.msra.mxu0 0.0
    %260 = vmatprep.subr.mxu0 0.0
    %261 = vmatpush1.msra.mxu0 0.0
    %262 = vmatprep.subr.mxu0 0.0
    %263 = vmatpush1.msra.mxu0 0.0
    %264 = vmatprep.subr.mxu0 0.0
    %265 = vmatpush1.msra.mxu0 0.0
    %266 = vmatprep.subr.mxu0 0.0
    %267 = vmatpush1.msra.mxu0 0.0
    %268 = vmatprep.mubr.f32.mxu0 0.0
    %269 = vmatmul.mubr.f32.gmra.mrb[0].mxu0 %v193
    %v270 = vpop.f32.mrb[0].mxu0
    %v271 = vadd.f32 %v174, %v270
    %v272 = vpop.f32.mrb[0].mxu0
    %273 = vmatprep.mubr.f32.mxu0 0.0
    %274 = vmatmul.mubr.f32.gmra.mrb[0].mxu0 %v196
    %v275 = vpop.f32.mrb[0].mxu0
    %v276 = vadd.f32 %v179, %v275
    %v277 = vpop.f32.mrb[0].mxu0
    %278 = vmatprep.mubr.f32.mxu0 0.0
    %279 = vmatmul.mubr.f32.gmra.mrb[0].mxu0 %v199
    %v280 = vpop.f32.mrb[0].mxu0
    %v281 = vadd.f32 %v184, %v280
    %v282 = vpop.f32.mrb[0].mxu0
    %283 = vmatprep.mubr.f32.mxu0 0.0
    %284 = vmatmul.mubr.f32.gmra.mrb[0].mxu0 %v202
    %v285 = vpop.f32.mrb[0].mxu0
    %v286 = vadd.f32 %v189, %v285
    %v287 = vpop.f32.mrb[0].mxu0
    %288 = vdwg.mxu0
    %v289 = vmul.f32 %v271, 0.01
    %v290 = vmul.f32 %v276, 0.01
    %v291 = vmul.f32 %v281, 0.01
    %v292 = vmul.f32 %v286, 0.01
    %v293 = vmax.f32 %v271, %v289
    %v294 = vmax.f32 %v276, %v290
    %v295 = vmax.f32 %v281, %v291
    %v296 = vmax.f32 %v286, %v292
    %v297 = vld [vmem:[%s5] sm:$0xff]
    %v298 = vld [vmem:[%s5 + $0x8] sm:$0xff]
    %v299 = vld [vmem:[%s5 + $0x10] sm:$0xff]
    %v300 = vld [vmem:[%s5 + $0x18] sm:$0xff]
    %302 = vset.pattern.permute.xlu0 0
    %303 = vperm.xlu0 %302, %v297
    %v304 = vpop.permute.xlu0 %303
    %307 = vset.pattern.permute.xlu0 0
    %308 = vperm.xlu0 %307, %v298
    %v309 = vpop.permute.xlu0 %308
    %312 = vset.pattern.permute.xlu0 0
    %313 = vperm.xlu0 %312, %v299
    %v314 = vpop.permute.xlu0 %313
    %317 = vset.pattern.permute.xlu0 0
    %318 = vperm.xlu0 %317, %v300
    %v319 = vpop.permute.xlu0 %318
    %v321 = vmul.f32 %v293, %v304
    %v322 = vmul.f32 %v294, %v309
    %v323 = vmul.f32 %v295, %v314
    %v324 = vmul.f32 %v296, %v319
    %vm325 = vcmask 64512
    %v326 = vsel %vm325, %v321, 0.0
    %v327 = vsel %vm325, %v322, 0.0
    %v328 = vadd.f32 %v326, %v327
    %v329 = vsel %vm325, %v323, 0.0
    %v330 = vadd.f32 %v328, %v329
    %v331 = vsel %vm325, %v324, 0.0
    %v332 = vadd.f32 %v330, %v331
    %v333 = vrot.slane %v332, 4
    %v334 = vadd.f32 %v332, %v333
    %v335 = vrot.slane %v334, 2
    %v336 = vadd.f32 %v334, %v335
    %v337 = vrot.slane %v336, 1
    %v338 = vadd.f32 %v336, %v337
    %v339 = vld [vmem:[#allocation2] sm:$0x1]
    %341 = vset.pattern.permute.xlu0 0
    %342 = vperm.xlu0 %341, %v339
    %v343 = vpop.permute.xlu0 %342
    %v345 = vlaneseq
    %v346 = vshrl.u32 %v345, 7
    %v347 = vsub.s32 0, %v346
    %v348 = vrot.slane %v343, %v347
    %v349 = vadd.f32 %v338, %v348
    %vm350 = vcmask 57344
    %351 = vst.msk [vmem:[#allocation3] sm:$0x1] %vm350, %v349
    // Predicated region
    $region30: #{tpu_custom_call.1} parent=1 // pred_check
      _
    $region31: #{tpu_custom_call.1} parent=1 // pred_check_branch
      %353 = sbr.rel (0) target = $region33
    $region32: #{tpu_custom_call.1} parent=1 // pred_region
      %s355 = ssub.s32 16, 16
      %356 = vsyncadd [#allocation4], %s355
      %s358 = sshll.u32 [#allocation3], 4
      %s359 = int_to_ptr.vmem [resolvable:$true] %s358
      %361 = dma.vmem_to_hbm [thread:$0]  %s359, 16, %s7, [#allocation4]
    $region33: #{tpu_custom_call.1} parent=1 // pred_fallthru
      _
    // Predicated region
    $region34: #{tpu_custom_call.1} parent=1 // pred_check
      _
    $region35: #{tpu_custom_call.1} parent=1 // pred_check_branch
      %363 = sbr.rel (0) target = $region37
    $region36: #{tpu_custom_call.1} parent=1 // pred_region
      %364 = dma.done [#allocation4], 16
    $region37: #{tpu_custom_call.1} parent=1 // pred_fallthru
      _
    %365 = vsyncpa [#allocation4], 1

</llo_original>
